<compile_context>
chip_gen: v7x
topology: tpu7x:2x2x1
jax: 0.10.0
libtpu: 0.0.40
codegen_flags: <defaults>
</compile_context>

<pallas_src>
import jax
import jax.numpy as jnp
from jax.experimental import pallas as pl
from jax.experimental.pallas import tpu as pltpu


def _dot_attention_kernel(s_ref, h_ref, o_ref, acc_ref):
    # s_ref, h_ref: (Bt, Dt, T) f32 ; o_ref: (Bt, T) f32 ; acc_ref: (Bt, T) f32
    k = pl.program_id(1)

    @pl.when(k == 0)
    def _():
        acc_ref[...] = jnp.zeros_like(acc_ref)

    # Elementwise product (full-width on the T lane axis), partial feature sum.
    acc_ref[...] += jnp.sum(s_ref[...] * h_ref[...], axis=1)

    # Finalize on the last D tile: softmax over T (== exp(log_softmax)).
    @pl.when(k == pl.num_programs(1) - 1)
    def _():
        att = acc_ref[...]                                # (Bt, T)
        m = jnp.max(att, axis=-1, keepdims=True)
        e = jnp.exp(att - m)
        denom = jnp.sum(e, axis=-1, keepdims=True)
        # approx=False keeps row sums exact (~1e-7); approx=True drifts ~1e-3.
        o_ref[...] = e * pl.reciprocal(denom, approx=False)


def _pick_tile(n, multiple, cap):
    """Largest divisor of n that is a multiple of `multiple` and <= cap, else n
    (the full dim, which also satisfies the (8,128) block-shape rule)."""
    best = None
    t = multiple
    while t <= min(n, cap):
        if n % t == 0:
            best = t
        t += multiple
    return best if best is not None else n


def dot_attention(s, h):
    """s, h: [B, T, D] float32 -> [B, T] float32 attention weights."""
    assert s.shape == h.shape and s.ndim == 3
    B, T, D = s.shape

    # Layout plumbing (wrapper-side): softmax axis T on lanes, reduced D on
    # sublanes.
    s_t = jnp.transpose(s, (0, 2, 1))    # (B, D, T)
    h_t = jnp.transpose(h, (0, 2, 1))    # (B, D, T)

    # Batch tile: multiple of 8 (or full B) so the (Bt, T) output block is a
    # legal sublane size.  Feature tile: multiple of 8 (or full D), capped so a
    # single input tile stays <= ~6 MiB -> double-buffered pipeline fits the
    # scoped VMEM of every TPU generation (incl. v7x's 64 MiB physical).
    bt = _pick_tile(B, 8, 128)
    tile_budget_bytes = 6 * 1024 * 1024
    max_dt = max(8, tile_budget_bytes // max(1, bt * T * 4))
    dt = _pick_tile(D, 8, min(512, max_dt))

    grid = (B // bt, D // dt)

    return pl.pallas_call(
        _dot_attention_kernel,
        out_shape=jax.ShapeDtypeStruct((B, T), jnp.float32),
        grid_spec=pltpu.PrefetchScalarGridSpec(
            num_scalar_prefetch=0,
            grid=grid,
            in_specs=[
                pl.BlockSpec((bt, dt, T), lambda b, k: (b, k, 0)),
                pl.BlockSpec((bt, dt, T), lambda b, k: (b, k, 0)),
            ],
            # Same output block across the D axis -> VMEM-resident accumulator.
            out_specs=pl.BlockSpec((bt, T), lambda b, k: (b, 0)),
            scratch_shapes=[pltpu.VMEM((bt, T), jnp.float32)],
        ),
        compiler_params=pltpu.CompilerParams(
            dimension_semantics=("parallel", "arbitrary"),
            vmem_limit_bytes=48 * 1024 * 1024,
        ),
    )(s_t, h_t)


def dot_attention_ref(s, h):
    """Pure-JAX reference of the PyTorch forward."""
    att = jnp.sum(s * h, axis=2)
    return jax.nn.softmax(att, axis=1)


if __name__ == "__main__":
    # DotAttentionLayer.__init__ only stores sizes; no learnable parameters.
    B, T, D = 2, 8, 32  # batch, seq, hidden/embedding size
    key = jax.random.PRNGKey(0)
    ks, kh = jax.random.split(key)
    s = jax.random.normal(ks, (B, T, D), dtype=jnp.float32)
    h = jax.random.normal(kh, (B, T, D), dtype=jnp.float32)

    out = jax.block_until_ready(dot_attention(s, h))
    ref = dot_attention_ref(s, h)

    assert out.shape == (B, T)
    assert jnp.allclose(out, ref, atol=1e-5, rtol=1e-5)
    # rows of the softmax output must sum to 1
    assert jnp.allclose(jnp.sum(out, axis=1), jnp.ones((B,)), atol=1e-5)

    print("KERNEL_OK")
</pallas_src>

<mosaic_0001>
module attributes {stable_mosaic.version = 11 : i64} {
  func.func @_dot_attention_kernel(%arg0: i32, %arg1: i32, %arg2: memref<2x32x8xf32, #tpu.memory_space<vmem>>, %arg3: memref<2x32x8xf32, #tpu.memory_space<vmem>>, %arg4: memref<2x8xf32, #tpu.memory_space<vmem>>, %arg5: memref<2x8xf32, #tpu.memory_space<vmem>>) attributes {dimension_semantics = [#tpu.dimension_semantics<parallel>, #tpu.dimension_semantics<arbitrary>], iteration_bounds = array<i64: 1, 1>, scalar_prefetch = 0 : i64, scratch_operands = 1 : i64, tpu.core_type = #tpu.core_type<tc>, window_params = [{transform_indices = @transform_0, window_bounds = array<i64: 2, 32, 8>}, {transform_indices = @transform_1, window_bounds = array<i64: 2, 32, 8>}, {transform_indices = @transform_2, window_bounds = array<i64: 2, 8>}]} {
    %c0_i32 = arith.constant 0 : i32
    %0 = arith.cmpi eq, %arg1, %c0_i32 : i32
    %1 = arith.extui %0 : i1 to i32
    %c0_i32_0 = arith.constant 0 : i32
    %2 = arith.cmpi ne, %1, %c0_i32_0 : i32
    scf.if %2 {
      %cst_12 = arith.constant 0.000000e+00 : f32
      %13 = vector.broadcast %cst_12 : f32 to vector<2x8xf32>
      %c0_13 = arith.constant 0 : index
      %c0_14 = arith.constant 0 : index
      %14 = vector.load %arg5[%c0_13, %c0_14] : memref<2x8xf32, #tpu.memory_space<vmem>>, vector<2x8xf32>
      tpu.vector_store %arg5[%c0_13, %c0_14], %13 {strides = array<i32>} : memref<2x8xf32, #tpu.memory_space<vmem>>, vector<2x8xf32>,
    } else {
    }
    %c0 = arith.constant 0 : index
    %c0_1 = arith.constant 0 : index
    %3 = vector.load %arg5[%c0, %c0_1] : memref<2x8xf32, #tpu.memory_space<vmem>>, vector<2x8xf32>
    %c0_2 = arith.constant 0 : index
    %c0_3 = arith.constant 0 : index
    %c0_4 = arith.constant 0 : index
    %4 = vector.load %arg2[%c0_2, %c0_3, %c0_4] : memref<2x32x8xf32, #tpu.memory_space<vmem>>, vector<2x32x8xf32>
    %c0_5 = arith.constant 0 : index
    %c0_6 = arith.constant 0 : index
    %c0_7 = arith.constant 0 : index
    %5 = vector.load %arg3[%c0_5, %c0_6, %c0_7] : memref<2x32x8xf32, #tpu.memory_space<vmem>>, vector<2x32x8xf32>
    %6 = arith.mulf %4, %5 : vector<2x32x8xf32>
    %cst = arith.constant dense<0.000000e+00> : vector<2x8xf32>
    %7 = vector.multi_reduction <add>, %6, %cst [1] : vector<2x32x8xf32> to vector<2x8xf32>
    %8 = arith.addf %3, %7 : vector<2x8xf32>
    %c0_8 = arith.constant 0 : index
    %c0_9 = arith.constant 0 : index
    %9 = vector.load %arg5[%c0_8, %c0_9] : memref<2x8xf32, #tpu.memory_space<vmem>>, vector<2x8xf32>
    tpu.vector_store %arg5[%c0_8, %c0_9], %8 {strides = array<i32>} : memref<2x8xf32, #tpu.memory_space<vmem>>, vector<2x8xf32>,
    %c0_i32_10 = arith.constant 0 : i32
    %10 = arith.cmpi eq, %arg1, %c0_i32_10 : i32
    %11 = arith.extui %10 : i1 to i32
    %c0_i32_11 = arith.constant 0 : i32
    %12 = arith.cmpi ne, %11, %c0_i32_11 : i32
    scf.if %12 {
      %c0_12 = arith.constant 0 : index
      %c0_13 = arith.constant 0 : index
      %13 = vector.load %arg5[%c0_12, %c0_13] : memref<2x8xf32, #tpu.memory_space<vmem>>, vector<2x8xf32>
      %cst_14 = arith.constant dense<0xFF800000> : vector<2xf32>
      %14 = vector.multi_reduction <maximumf>, %13, %cst_14 [1] : vector<2x8xf32> to vector<2xf32>
      %15 = vector.shape_cast %14 : vector<2xf32> to vector<2x1xf32>
      %16 = vector.broadcast %15 : vector<2x1xf32> to vector<2x8xf32>
      %17 = arith.subf %13, %16 : vector<2x8xf32>
      %18 = math.exp %17 : vector<2x8xf32>
      %cst_15 = arith.constant dense<0.000000e+00> : vector<2xf32>
      %19 = vector.multi_reduction <add>, %18, %cst_15 [1] : vector<2x8xf32> to vector<2xf32>
      %20 = vector.shape_cast %19 : vector<2xf32> to vector<2x1xf32>
      %21 = tpu.reciprocal %20 : vector<2x1xf32> -> vector<2x1xf32>
      %22 = vector.broadcast %21 : vector<2x1xf32> to vector<2x8xf32>
      %23 = arith.mulf %18, %22 : vector<2x8xf32>
      %c0_16 = arith.constant 0 : index
      %c0_17 = arith.constant 0 : index
      %24 = vector.load %arg4[%c0_16, %c0_17] : memref<2x8xf32, #tpu.memory_space<vmem>>, vector<2x8xf32>
      tpu.vector_store %arg4[%c0_16, %c0_17], %23 {strides = array<i32>} : memref<2x8xf32, #tpu.memory_space<vmem>>, vector<2x8xf32>,
    } else {
    }
    return
  }
  func.func @transform_0(%arg0: i32, %arg1: i32) -> (i32, i32, i32) {
    %c0_i32 = arith.constant 0 : i32
    %c0_i32_0 = arith.constant 0 : i32
    return %arg0, %arg1, %c0_i32 : i32, i32, i32
  }
  func.func @transform_1(%arg0: i32, %arg1: i32) -> (i32, i32, i32) {
    %c0_i32 = arith.constant 0 : i32
    %c0_i32_0 = arith.constant 0 : i32
    return %arg0, %arg1, %c0_i32 : i32, i32, i32
  }
  func.func @transform_2(%arg0: i32, %arg1: i32) -> (i32, i32) {
    %c0_i32 = arith.constant 0 : i32
    %c0_i32_0 = arith.constant 0 : i32
    return %arg0, %c0_i32 : i32, i32
  }
}

</mosaic_0001>

<llo_original>
// kernel: tpu_custom_call.1
$region0: #{tpu_custom_call.1}
  #allocation0 [shape = 'u32[]', space=smem, size = 0x4, offset = 0x4, fixed_abs, tag = 'smem constant byte address 0x4 - core index']
  #allocation1 [shape = 'u32[144,128]{1,0:T(1,128)}', space=vmem, size = 0x12000, scoped, tag = 'internal scratch']
  #allocation2 [shape = 'f32[2,8]{1,0:T(2,128)}', space=vmem, size = 0x400, scoped, tag = 'scratch operand']
  %s0 = inlined_call_operand.vmem [shape: f32[2,32,8], index: 0, kind: input, shape index: {}]
  %s1 = inlined_call_operand.vmem [shape: f32[2,32,8], index: 1, kind: input, shape index: {}]
  %s2 = inlined_call_operand.hbm [shape: f32[2,8], index: 2, kind: output, shape index: {}]
  %s3 = sld [smem:[#allocation0]]
  $region26: #{tpu_custom_call.1} parent=0
    _
  %s5 = ssub.s32 1, %s3
  %s6 = scalar_select 0, %s5, %s3
  $region1: #{tpu_custom_call.1} parent=0
    #allocation3 [shape = 'u8[1024]{0}', space=vmem, size = 0x400, scoped, tag = 'output window, operand 0, single buffered']
    #allocation4 [shape = 's32[1]{0}', space=sflag, size = 0x4, scoped, tag = 'scoped memory for tpu_custom_call.1']
    %7 = vsyncpa [#allocation4], 0
    // Predicated region
    $region2: #{tpu_custom_call.1} parent=1 // pred_check
      _
    $region3: #{tpu_custom_call.1} parent=1 // pred_check_branch
      %9 = sbr.rel (0) target = $region5
    $region4: #{tpu_custom_call.1} parent=1 // pred_region
      _
    $region5: #{tpu_custom_call.1} parent=1 // pred_fallthru
      _
    // Predicated region
    $region6: #{tpu_custom_call.1} parent=1 // pred_check
      _
    $region7: #{tpu_custom_call.1} parent=1 // pred_check_branch
      %11 = sbr.rel (0) target = $region9
    $region8: #{tpu_custom_call.1} parent=1 // pred_region
      _
    $region9: #{tpu_custom_call.1} parent=1 // pred_fallthru
      _
    %p12 = scmp.eq.s32.totalorder 0, 0
    // Predicated region
    $region10: #{tpu_custom_call.1} parent=1 // pred_check
      %p13 = pneg %p12
    $region11: #{tpu_custom_call.1} parent=1 // pred_check_branch
      %15 = sbr.rel (%p13) target = $region13
    $region12: #{tpu_custom_call.1} parent=1 // pred_region
      %vm16 = vcmask 58368
      %17 = vst.msk [vmem:[#allocation2] sm:$0x3] %vm16, 0.0
    $region13: #{tpu_custom_call.1} parent=1 // pred_fallthru
      _
    %v18 = vld [vmem:[#allocation2] sm:$0x3]
    %v19 = vld [vmem:[%s0] sm:$0xff]
    %v20 = vld [vmem:[%s0 + $0x8] sm:$0xff]
    %v21 = vld [vmem:[%s0 + $0x10] sm:$0xff]
    %v22 = vld [vmem:[%s0 + $0x18] sm:$0xff]
    %v23 = vld [vmem:[%s0 + $0x20] sm:$0xff]
    %v24 = vld [vmem:[%s0 + $0x28] sm:$0xff]
    %v25 = vld [vmem:[%s0 + $0x30] sm:$0xff]
    %v26 = vld [vmem:[%s0 + $0x38] sm:$0xff]
    %v27 = vld [vmem:[%s1] sm:$0xff]
    %v28 = vld [vmem:[%s1 + $0x8] sm:$0xff]
    %v29 = vld [vmem:[%s1 + $0x10] sm:$0xff]
    %v30 = vld [vmem:[%s1 + $0x18] sm:$0xff]
    %v31 = vld [vmem:[%s1 + $0x20] sm:$0xff]
    %v32 = vld [vmem:[%s1 + $0x28] sm:$0xff]
    %v33 = vld [vmem:[%s1 + $0x30] sm:$0xff]
    %v34 = vld [vmem:[%s1 + $0x38] sm:$0xff]
    %v35 = vmul.f32 %v19, %v27
    %v36 = vmul.f32 %v20, %v28
    %v37 = vmul.f32 %v21, %v29
    %v38 = vmul.f32 %v22, %v30
    %v39 = vmul.f32 %v23, %v31
    %v40 = vmul.f32 %v24, %v32
    %v41 = vmul.f32 %v25, %v33
    %v42 = vmul.f32 %v26, %v34
    %vm43 = vcmask 64512
    %v44 = vsel %vm43, %v35, 0.0
    %v45 = vsel %vm43, %v36, 0.0
    %v46 = vadd.f32 %v44, %v45
    %v47 = vsel %vm43, %v37, 0.0
    %v48 = vadd.f32 %v46, %v47
    %v49 = vsel %vm43, %v38, 0.0
    %v50 = vadd.f32 %v48, %v49
    %v51 = vrot.slane %v50, 4
    %v52 = vadd.f32 %v50, %v51
    %v53 = vrot.slane %v52, 2
    %v54 = vadd.f32 %v52, %v53
    %v55 = vrot.slane %v54, 1
    %v56 = vadd.f32 %v54, %v55
    %v57 = vsel %vm43, %v39, 0.0
    %v58 = vsel %vm43, %v40, 0.0
    %v59 = vadd.f32 %v57, %v58
    %v60 = vsel %vm43, %v41, 0.0
    %v61 = vadd.f32 %v59, %v60
    %v62 = vsel %vm43, %v42, 0.0
    %v63 = vadd.f32 %v61, %v62
    %v64 = vrot.slane %v63, 4
    %v65 = vadd.f32 %v63, %v64
    %v66 = vrot.slane %v65, 2
    %v67 = vadd.f32 %v65, %v66
    %v68 = vrot.slane %v67, 1
    %v69 = vadd.f32 %v67, %v68
    %vm72 = vcmask 1041409
    %v73 = vsel %vm72, %v69, %v56
    %v75 = vadd.f32 %v18, %v73
    %vm76 = vcmask 58368
    %77 = vst.msk [vmem:[#allocation2] sm:$0x3] %vm76, %v75
    // Predicated region
    $region14: #{tpu_custom_call.1} parent=1 // pred_check
      %p78 = pneg %p12
    $region15: #{tpu_custom_call.1} parent=1 // pred_check_branch
      %80 = sbr.rel (%p78) target = $region17
    $region16: #{tpu_custom_call.1} parent=1 // pred_region
      %v81 = vld [vmem:[#allocation2] sm:$0x3]
      %v82 = vsel %vm76, %v81, -inf
      %83 = vmax.xlane.f32.xlu0 %v82
      %v84 = vpop.xlane.xlu0 %83
      %v85 = vsub.f32 %v81, %v84
      %v86 = vmul.f32 %v85, 1.442695
      %v87 = vpow.pop %v86
      %v88 = vsel %vm76, %v87, 0.0
      %89 = vadd.xlane.f32.xlu0 %v88
      %v90 = vpop.xlane.xlu0 %89
      %v91 = vrcp.pop %v90
      %v92 = vmul.f32 %v87, %v91
      %93 = vst.msk [vmem:[#allocation3] sm:$0x3] %vm76, %v92
    $region17: #{tpu_custom_call.1} parent=1 // pred_fallthru
      _
    // Predicated region
    $region18: #{tpu_custom_call.1} parent=1 // pred_check
      _
    $region19: #{tpu_custom_call.1} parent=1 // pred_check_branch
      %95 = sbr.rel (0) target = $region21
    $region20: #{tpu_custom_call.1} parent=1 // pred_region
      %s97 = ssub.s32 32, 32
      %98 = vsyncadd [#allocation4], %s97
      %s100 = sshll.u32 [#allocation3], 4
      %s101 = int_to_ptr.vmem [resolvable:$true] %s100
      %103 = dma.vmem_to_hbm [thread:$0]  %s101, 32, %s2, [#allocation4]
    $region21: #{tpu_custom_call.1} parent=1 // pred_fallthru
      _
    // Predicated region
    $region22: #{tpu_custom_call.1} parent=1 // pred_check
      _
    $region23: #{tpu_custom_call.1} parent=1 // pred_check_branch
      %105 = sbr.rel (0) target = $region25
    $region24: #{tpu_custom_call.1} parent=1 // pred_region
      %106 = dma.done [#allocation4], 32
    $region25: #{tpu_custom_call.1} parent=1 // pred_fallthru
      _
    %107 = vsyncpa [#allocation4], 1

</llo_original>
